<compile_context>
chip_gen: v5e
topology: v5e:2x2
jax: 0.10.0
libtpu: 0.0.40
codegen_flags: <defaults>
</compile_context>

<pallas_src>
import jax
import jax.numpy as jnp
from jax.experimental import pallas as pl
from jax.experimental.pallas import tpu as pltpu


def _round_up(x: int, m: int) -> int:
    return ((x + m - 1) // m) * m


def _rpn_fused_kernel(x_ref, w1_ref, b1_ref, w2_ref, b2_ref, o_ref):
    """out = relu(x @ [wt1|wp1] + [bt1|bp1]) @ [wt2 ; beta*wp2] + (bt2 + beta*bp2)."""
    x = x_ref[...]                                                       # [TB, Dp]
    h = jnp.dot(x, w1_ref[...], preferred_element_type=jnp.float32)     # [TB, Hp]
    h = jnp.maximum(h + b1_ref[...], 0.0)
    h = h.astype(w2_ref.dtype)                                           # no-op for f32
    y = jnp.dot(h, w2_ref[...], preferred_element_type=jnp.float32)     # [TB, Cp]
    o_ref[...] = (y + b2_ref[...]).astype(o_ref.dtype)


def _derived_vmem_limit(tb, dp, hp, cp, itemsize=4):
    # Double-buffered input/weight/bias/output tiles + generous headroom for
    # intermediates and compiler-internal scratch (floor of 4 MiB).
    tiles = 2 * (tb * dp + dp * hp + 8 * hp + hp * cp + 8 * cp + tb * cp)
    return max(2 * tiles * itemsize, 4 * 1024 * 1024)


def randomized_prior_forward(x_nchw, params, *, beta: float = 1.0,
                             block_b: int = 128,
                             compute_dtype=jnp.float32):
    """Flatten NCHW input, fuse the two MLPs, run one batch-tiled Pallas kernel."""
    B = x_nchw.shape[0]
    x = x_nchw.reshape(B, -1).astype(jnp.float32)                        # [B, D]
    D = x.shape[1]
    H = params["wt1"].shape[1]
    C = params["wt2"].shape[1]
    H2 = 2 * H

    # ---- Algebraic fusion (beta folded into the prior's second layer) ----
    w1 = jnp.concatenate([params["wt1"], params["wp1"]], axis=1)         # [D, 2H]
    b1 = jnp.concatenate([params["bt1"], params["bp1"]], axis=1)         # [1, 2H]
    w2 = jnp.concatenate([params["wt2"], beta * params["wp2"]], axis=0)  # [2H, C]
    b2 = params["bt2"] + beta * params["bp2"]                            # [1, C]

    # ---- Zero-padding to (8, 128)-aligned, lane-dense shapes (exact math) ----
    Dp = _round_up(D, 128)
    Hp = _round_up(H2, 128)
    Cp = _round_up(C, 128)
    TB = min(block_b, _round_up(B, 8))
    Bp = _round_up(B, TB)

    x_p = jnp.zeros((Bp, Dp), jnp.float32).at[:B, :D].set(x)
    w1_p = jnp.zeros((Dp, Hp), jnp.float32).at[:D, :H2].set(w1)
    b1_p = jnp.zeros((1, Hp), jnp.float32).at[:, :H2].set(b1)
    w2_p = jnp.zeros((Hp, Cp), jnp.float32).at[:H2, :C].set(w2)
    b2_p = jnp.zeros((1, Cp), jnp.float32).at[:, :C].set(b2)

    if compute_dtype != jnp.float32:
        # Optional bf16 path (v6e MXU); accumulation stays f32 in the kernel.
        x_p = x_p.astype(compute_dtype)
        w1_p = w1_p.astype(compute_dtype)
        w2_p = w2_p.astype(compute_dtype)

    grid = (Bp // TB,)

    cost = pl.CostEstimate(
        flops=2 * Bp * (Dp * Hp + Hp * Cp),
        transcendentals=0,
        bytes_accessed=4 * (Bp * Dp + Dp * Hp + Hp + Hp * Cp + Cp + Bp * Cp),
    )

    out_p = pl.pallas_call(
        _rpn_fused_kernel,
        out_shape=jax.ShapeDtypeStruct((Bp, Cp), jnp.float32),
        grid=grid,
        in_specs=[
            pl.BlockSpec((TB, Dp), lambda i: (i, 0)),    # x tile (pipelined over batch)
            pl.BlockSpec((Dp, Hp), lambda i: (0, 0)),    # fused W1 (VMEM-resident)
            pl.BlockSpec((1, Hp), lambda i: (0, 0)),     # fused b1
            pl.BlockSpec((Hp, Cp), lambda i: (0, 0)),    # fused W2 (beta folded)
            pl.BlockSpec((1, Cp), lambda i: (0, 0)),     # fused b2 (beta folded)
        ],
        out_specs=pl.BlockSpec((TB, Cp), lambda i: (i, 0)),
        compiler_params=pltpu.CompilerParams(
            dimension_semantics=("parallel",),
            vmem_limit_bytes=_derived_vmem_limit(TB, Dp, Hp, Cp),
        ),
        cost_estimate=cost,
    )(x_p, w1_p, b1_p, w2_p, b2_p)

    # Strip batch/output padding.
    return out_p[:B, :C]


def make_params(key, d_in, d_hidden, d_out):
    """Deterministic synthetic parameters for both MLPs (weights stored as [in, out])."""
    ks = jax.random.split(key, 8)
    scale1 = 1.0 / jnp.sqrt(d_in)
    scale2 = 1.0 / jnp.sqrt(d_hidden)
    return {
        # trainable net
        "wt1": jax.random.normal(ks[0], (d_in, d_hidden), jnp.float32) * scale1,
        "bt1": jax.random.normal(ks[1], (1, d_hidden), jnp.float32) * 0.01,
        "wt2": jax.random.normal(ks[2], (d_hidden, d_out), jnp.float32) * scale2,
        "bt2": jax.random.normal(ks[3], (1, d_out), jnp.float32) * 0.01,
        # prior net (frozen in the torch module; forward math identical)
        "wp1": jax.random.normal(ks[4], (d_in, d_hidden), jnp.float32) * scale1,
        "bp1": jax.random.normal(ks[5], (1, d_hidden), jnp.float32) * 0.01,
        "wp2": jax.random.normal(ks[6], (d_hidden, d_out), jnp.float32) * scale2,
        "bp2": jax.random.normal(ks[7], (1, d_out), jnp.float32) * 0.01,
    }


def _reference(x_nchw, params, beta):
    """Pure-JAX reference for correctness check (unfused, f32)."""
    x = x_nchw.reshape(x_nchw.shape[0], -1).astype(jnp.float32)

    def mlp(w1, b1, w2, b2):
        h = jnp.maximum(x @ w1 + b1, 0.0)
        return h @ w2 + b2

    y_t = mlp(params["wt1"], params["bt1"], params["wt2"], params["bt2"])
    y_p = mlp(params["wp1"], params["bp1"], params["wp2"], params["bp2"])
    return y_t + beta * y_p


if __name__ == "__main__":
    C_IN, HW = 1, 16                 # MNIST-like input: [B, 1, 16, 16]
    D_IN = C_IN * HW * HW            # 256
    D_HID = 32
    D_OUT = 10
    BETA = 3.0                       # non-trivial beta to exercise the folding

    key = jax.random.PRNGKey(0)
    k_x, k_p, k_x2 = jax.random.split(key, 3)
    params = make_params(k_p, D_IN, D_HID, D_OUT)

    # --- small, module-consistent example (batch = 2) ---
    x_small = jax.random.normal(k_x, (2, C_IN, HW, HW), jnp.float32)
    out_small = jax.block_until_ready(randomized_prior_forward(x_small, params, beta=BETA))
    ref_small = _reference(x_small, params, BETA)
    assert out_small.shape == (2, D_OUT)
    assert jnp.allclose(out_small, ref_small, atol=1e-4, rtol=1e-4), "small-batch mismatch"

    # --- larger batch to exercise the batch grid + padding/slicing path ---
    x_big = jax.random.normal(k_x2, (270, C_IN, HW, HW), jnp.float32)
    out_big = jax.block_until_ready(randomized_prior_forward(x_big, params, beta=BETA))
    ref_big = _reference(x_big, params, BETA)
    assert out_big.shape == (270, D_OUT)
    assert jnp.allclose(out_big, ref_big, atol=1e-4, rtol=1e-4), "tiled-batch mismatch"

    print("KERNEL_OK")
</pallas_src>

<mosaic_0001>
module attributes {stable_mosaic.version = 11 : i64} {
  func.func @_rpn_fused_kernel(%arg0: i32, %arg1: memref<8x256xf32, #tpu.memory_space<vmem>>, %arg2: memref<256x128xf32, #tpu.memory_space<vmem>>, %arg3: memref<1x128xf32, #tpu.memory_space<vmem>>, %arg4: memref<128x128xf32, #tpu.memory_space<vmem>>, %arg5: memref<1x128xf32, #tpu.memory_space<vmem>>, %arg6: memref<8x128xf32, #tpu.memory_space<vmem>>) attributes {dimension_semantics = [#tpu.dimension_semantics<parallel>], iteration_bounds = array<i64: 1>, scalar_prefetch = 0 : i64, scratch_operands = 0 : i64, tpu.core_type = #tpu.core_type<tc>, window_params = [{transform_indices = @transform_0, window_bounds = array<i64: 8, 256>}, {pipeline_mode = #tpu.pipeline_mode<synchronous>, transform_indices = @transform_1, window_bounds = array<i64: 256, 128>}, {pipeline_mode = #tpu.pipeline_mode<synchronous>, transform_indices = @transform_2, window_bounds = array<i64: 1, 128>}, {pipeline_mode = #tpu.pipeline_mode<synchronous>, transform_indices = @transform_3, window_bounds = array<i64: 128, 128>}, {pipeline_mode = #tpu.pipeline_mode<synchronous>, transform_indices = @transform_4, window_bounds = array<i64: 1, 128>}, {transform_indices = @transform_5, window_bounds = array<i64: 8, 128>}]} {
    %c0 = arith.constant 0 : index
    %c0_0 = arith.constant 0 : index
    %0 = vector.load %arg1[%c0, %c0_0] : memref<8x256xf32, #tpu.memory_space<vmem>>, vector<8x256xf32>
    %c0_1 = arith.constant 0 : index
    %c0_2 = arith.constant 0 : index
    %1 = vector.load %arg2[%c0_1, %c0_2] : memref<256x128xf32, #tpu.memory_space<vmem>>, vector<256x128xf32>
    %cst = arith.constant dense<0.000000e+00> : vector<8x128xf32>
    %2 = tpu.matmul %0, %1, %cst {dimension_numbers = #tpu.dot_dimension_numbers<[1], [0], [0], [1], [0, 0, 1, 1], [], []>} : vector<8x256xf32>, vector<256x128xf32>, vector<8x128xf32> -> vector<8x128xf32>
    %c0_3 = arith.constant 0 : index
    %c0_4 = arith.constant 0 : index
    %3 = vector.load %arg3[%c0_3, %c0_4] : memref<1x128xf32, #tpu.memory_space<vmem>>, vector<1x128xf32>
    %4 = vector.broadcast %3 : vector<1x128xf32> to vector<8x128xf32>
    %5 = arith.addf %2, %4 : vector<8x128xf32>
    %cst_5 = arith.constant 0.000000e+00 : f32
    %6 = vector.broadcast %cst_5 : f32 to vector<8x128xf32>
    %7 = arith.maximumf %5, %6 : vector<8x128xf32>
    %c0_6 = arith.constant 0 : index
    %c0_7 = arith.constant 0 : index
    %8 = vector.load %arg4[%c0_6, %c0_7] : memref<128x128xf32, #tpu.memory_space<vmem>>, vector<128x128xf32>
    %cst_8 = arith.constant dense<0.000000e+00> : vector<8x128xf32>
    %9 = tpu.matmul %7, %8, %cst_8 {dimension_numbers = #tpu.dot_dimension_numbers<[1], [0], [0], [1], [0, 0, 1, 1], [], []>} : vector<8x128xf32>, vector<128x128xf32>, vector<8x128xf32> -> vector<8x128xf32>
    %c0_9 = arith.constant 0 : index
    %c0_10 = arith.constant 0 : index
    %10 = vector.load %arg5[%c0_9, %c0_10] : memref<1x128xf32, #tpu.memory_space<vmem>>, vector<1x128xf32>
    %11 = vector.broadcast %10 : vector<1x128xf32> to vector<8x128xf32>
    %12 = arith.addf %9, %11 : vector<8x128xf32>
    %c0_11 = arith.constant 0 : index
    %c0_12 = arith.constant 0 : index
    %13 = vector.load %arg6[%c0_11, %c0_12] : memref<8x128xf32, #tpu.memory_space<vmem>>, vector<8x128xf32>
    tpu.vector_store %arg6[%c0_11, %c0_12], %12 {strides = array<i32>} : memref<8x128xf32, #tpu.memory_space<vmem>>, vector<8x128xf32>,
    return
  }
  func.func @transform_0(%arg0: i32) -> (i32, i32) {
    %c0_i32 = arith.constant 0 : i32
    %c0_i32_0 = arith.constant 0 : i32
    return %arg0, %c0_i32 : i32, i32
  }
  func.func @transform_1(%arg0: i32) -> (i32, i32) {
    %c0_i32 = arith.constant 0 : i32
    %c0_i32_0 = arith.constant 0 : i32
    %c0_i32_1 = arith.constant 0 : i32
    return %c0_i32, %c0_i32_0 : i32, i32
  }
  func.func @transform_2(%arg0: i32) -> (i32, i32) {
    %c0_i32 = arith.constant 0 : i32
    %c0_i32_0 = arith.constant 0 : i32
    %c0_i32_1 = arith.constant 0 : i32
    return %c0_i32, %c0_i32_0 : i32, i32
  }
  func.func @transform_3(%arg0: i32) -> (i32, i32) {
    %c0_i32 = arith.constant 0 : i32
    %c0_i32_0 = arith.constant 0 : i32
    %c0_i32_1 = arith.constant 0 : i32
    return %c0_i32, %c0_i32_0 : i32, i32
  }
  func.func @transform_4(%arg0: i32) -> (i32, i32) {
    %c0_i32 = arith.constant 0 : i32
    %c0_i32_0 = arith.constant 0 : i32
    %c0_i32_1 = arith.constant 0 : i32
    return %c0_i32, %c0_i32_0 : i32, i32
  }
  func.func @transform_5(%arg0: i32) -> (i32, i32) {
    %c0_i32 = arith.constant 0 : i32
    %c0_i32_0 = arith.constant 0 : i32
    return %arg0, %c0_i32 : i32, i32
  }
}

</mosaic_0001>

<llo_original>
// kernel: tpu_custom_call.1
$region0: #{tpu_custom_call.1}
  #allocation0 [shape = 'u32[]', space=smem, size = 0x4, offset = 0x4, fixed_abs, tag = 'smem constant byte address 0x4 - core index']
  #allocation1 [shape = 'u32[72,128]{1,0:T(1,128)}', space=vmem, size = 0x9000, scoped, tag = 'internal scratch']
  %s0 = inlined_call_operand.hbm [shape: f32[8,256], index: 0, kind: input, shape index: {}]
  %s1 = inlined_call_operand.hbm [shape: f32[256,128], index: 1, kind: input, shape index: {}]
  %s2 = inlined_call_operand.vmem [shape: f32[1,128], index: 2, kind: input, shape index: {}]
  %s3 = inlined_call_operand.hbm [shape: f32[128,128], index: 3, kind: input, shape index: {}]
  %s4 = inlined_call_operand.vmem [shape: f32[1,128], index: 4, kind: input, shape index: {}]
  %s5 = inlined_call_operand.hbm [shape: f32[8,128], index: 5, kind: output, shape index: {}]
  %s6 = sld [smem:[#allocation0]]
  $region42: #{tpu_custom_call.1} parent=0
    _
  %s8 = ssub.s32 1, %s6
  %s9 = scalar_select 0, %s8, %s6
  $region1: #{tpu_custom_call.1} parent=0
    #allocation2 [shape = 'u8[8192]{0}', space=vmem, size = 0x2000, scoped, tag = 'input window, operand 0, single buffered']
    #allocation3 [shape = 's32[1]{0}', space=sflag, size = 0x4, scoped, tag = 'scoped memory for tpu_custom_call.1']
    #allocation4 [shape = 's32[1]{0}', space=sflag, size = 0x4, scoped, tag = 'scoped memory for tpu_custom_call.1']
    #allocation5 [shape = 'u8[131072]{0}', space=vmem, size = 0x20000, scoped, tag = 'input window, operand 1, single buffered']
    #allocation6 [shape = 's32[1]{0}', space=sflag, size = 0x4, scoped, tag = 'scoped memory for tpu_custom_call.1']
    #allocation7 [shape = 'u8[65536]{0}', space=vmem, size = 0x10000, scoped, tag = 'input window, operand 3, single buffered']
    #allocation8 [shape = 'u8[4096]{0}', space=vmem, size = 0x1000, scoped, tag = 'output window, operand 0, single buffered']
    %10 = vsyncpa [#allocation3], 0
    %11 = vsyncpa [#allocation6], 0
    %12 = vsyncpa [#allocation4], 0
    // Predicated region
    $region2: #{tpu_custom_call.1} parent=1 // pred_check
      _
    $region3: #{tpu_custom_call.1} parent=1 // pred_check_branch
      %14 = sbr.rel (0) target = $region5
    $region4: #{tpu_custom_call.1} parent=1 // pred_region
      %16 = vsyncadd [#allocation3], 0
      %s18 = sshll.u32 %s0, 4
      %s19 = int_to_ptr.hbm [resolvable:$true] %s18
      %s20 = sshll.u32 [#allocation2], 4
      %s21 = int_to_ptr.vmem [resolvable:$true] %s20
      %23 = dma.hbm_to_vmem [thread:$0]  %s19, 256, %s21, [#allocation3]
    $region5: #{tpu_custom_call.1} parent=1 // pred_fallthru
      _
    // Predicated region
    $region6: #{tpu_custom_call.1} parent=1 // pred_check
      _
    $region7: #{tpu_custom_call.1} parent=1 // pred_check_branch
      %25 = sbr.rel (0) target = $region9
    $region8: #{tpu_custom_call.1} parent=1 // pred_region
      %27 = vsyncadd [#allocation6], 0
      %s28 = sshll.u32 %s1, 4
      %s29 = int_to_ptr.hbm [resolvable:$true] %s28
      %s30 = sshll.u32 [#allocation5], 4
      %s31 = int_to_ptr.vmem [resolvable:$true] %s30
      %36 = dma.hbm_to_vmem [thread:$0]  %s29, 4096, %s31, [#allocation6], 128, 128, 8
    $region9: #{tpu_custom_call.1} parent=1 // pred_fallthru
      _
    // Predicated region
    $region10: #{tpu_custom_call.1} parent=1 // pred_check
      _
    $region11: #{tpu_custom_call.1} parent=1 // pred_check_branch
      %38 = sbr.rel (0) target = $region13
    $region12: #{tpu_custom_call.1} parent=1 // pred_region
      _
    $region13: #{tpu_custom_call.1} parent=1 // pred_fallthru
      _
    // Predicated region
    $region14: #{tpu_custom_call.1} parent=1 // pred_check
      _
    $region15: #{tpu_custom_call.1} parent=1 // pred_check_branch
      %40 = sbr.rel (0) target = $region17
    $region16: #{tpu_custom_call.1} parent=1 // pred_region
      %42 = vsyncadd [#allocation6], 0
      %s43 = sshll.u32 %s3, 4
      %s44 = int_to_ptr.hbm [resolvable:$true] %s43
      %s45 = sshll.u32 [#allocation7], 4
      %s46 = int_to_ptr.vmem [resolvable:$true] %s45
      %51 = dma.hbm_to_vmem [thread:$0]  %s44, 2048, %s46, [#allocation6], 128, 128, 8
    $region17: #{tpu_custom_call.1} parent=1 // pred_fallthru
      _
    // Predicated region
    $region18: #{tpu_custom_call.1} parent=1 // pred_check
      _
    $region19: #{tpu_custom_call.1} parent=1 // pred_check_branch
      %53 = sbr.rel (0) target = $region21
    $region20: #{tpu_custom_call.1} parent=1 // pred_region
      _
    $region21: #{tpu_custom_call.1} parent=1 // pred_fallthru
      _
    // Predicated region
    $region22: #{tpu_custom_call.1} parent=1 // pred_check
      _
    $region23: #{tpu_custom_call.1} parent=1 // pred_check_branch
      %55 = sbr.rel (0) target = $region25
    $region24: #{tpu_custom_call.1} parent=1 // pred_region
      %57 = dma.done [#allocation3], 256
    $region25: #{tpu_custom_call.1} parent=1 // pred_fallthru
      _
    // Predicated region
    $region26: #{tpu_custom_call.1} parent=1 // pred_check
      _
    $region27: #{tpu_custom_call.1} parent=1 // pred_check_branch
      %59 = sbr.rel (0) target = $region29
    $region28: #{tpu_custom_call.1} parent=1 // pred_region
      %61 = dma.done [#allocation6], 4096
    $region29: #{tpu_custom_call.1} parent=1 // pred_fallthru
      _
    // Predicated region
    $region30: #{tpu_custom_call.1} parent=1 // pred_check
      _
    $region31: #{tpu_custom_call.1} parent=1 // pred_check_branch
      %63 = sbr.rel (0) target = $region33
    $region32: #{tpu_custom_call.1} parent=1 // pred_region
      %65 = dma.done [#allocation6], 2048
    $region33: #{tpu_custom_call.1} parent=1 // pred_fallthru
      _
    %v66 = vld [vmem:[#allocation2] sm:$0xff]
    %v67 = vld [vmem:[#allocation2 + $0x8] sm:$0xff]
    %v68 = vld [vmem:[#allocation5] sm:$0xff]
    %v69 = vld [vmem:[#allocation5 + $0x8] sm:$0xff]
    %v70 = vld [vmem:[#allocation5 + $0x10] sm:$0xff]
    %v71 = vld [vmem:[#allocation5 + $0x18] sm:$0xff]
    %v72 = vld [vmem:[#allocation5 + $0x20] sm:$0xff]
    %v73 = vld [vmem:[#allocation5 + $0x28] sm:$0xff]
    %v74 = vld [vmem:[#allocation5 + $0x30] sm:$0xff]
    %v75 = vld [vmem:[#allocation5 + $0x38] sm:$0xff]
    %v76 = vld [vmem:[#allocation5 + $0x40] sm:$0xff]
    %v77 = vld [vmem:[#allocation5 + $0x48] sm:$0xff]
    %v78 = vld [vmem:[#allocation5 + $0x50] sm:$0xff]
    %v79 = vld [vmem:[#allocation5 + $0x58] sm:$0xff]
    %v80 = vld [vmem:[#allocation5 + $0x60] sm:$0xff]
    %v81 = vld [vmem:[#allocation5 + $0x68] sm:$0xff]
    %v82 = vld [vmem:[#allocation5 + $0x70] sm:$0xff]
    %v83 = vld [vmem:[#allocation5 + $0x78] sm:$0xff]
    %v84 = vld [vmem:[#allocation5 + $0x80] sm:$0xff]
    %v85 = vld [vmem:[#allocation5 + $0x88] sm:$0xff]
    %v86 = vld [vmem:[#allocation5 + $0x90] sm:$0xff]
    %v87 = vld [vmem:[#allocation5 + $0x98] sm:$0xff]
    %v88 = vld [vmem:[#allocation5 + $0xa0] sm:$0xff]
    %v89 = vld [vmem:[#allocation5 + $0xa8] sm:$0xff]
    %v90 = vld [vmem:[#allocation5 + $0xb0] sm:$0xff]
    %v91 = vld [vmem:[#allocation5 + $0xb8] sm:$0xff]
    %v92 = vld [vmem:[#allocation5 + $0xc0] sm:$0xff]
    %v93 = vld [vmem:[#allocation5 + $0xc8] sm:$0xff]
    %v94 = vld [vmem:[#allocation5 + $0xd0] sm:$0xff]
    %v95 = vld [vmem:[#allocation5 + $0xd8] sm:$0xff]
    %v96 = vld [vmem:[#allocation5 + $0xe0] sm:$0xff]
    %v97 = vld [vmem:[#allocation5 + $0xe8] sm:$0xff]
    %v98 = vld [vmem:[#allocation5 + $0xf0] sm:$0xff]
    %v99 = vld [vmem:[#allocation5 + $0xf8] sm:$0xff]
    %v100 = vld [vmem:[%s2] sm:$0x1]
    %v102 = vperm.slane %v100, 0
    %104 = vmatpush.msra.mxu0 %v83
    %105 = vmatpush.msra.mxu0 %v82
    %106 = vmatpush.msra.mxu0 %v81
    %107 = vmatpush.msra.mxu0 %v80
    %108 = vmatpush.msra.mxu0 %v79
    %109 = vmatpush.msra.mxu0 %v78
    %110 = vmatpush.msra.mxu0 %v77
    %111 = vmatpush.msra.mxu0 %v76
    %112 = vmatpush.msra.mxu0 %v75
    %113 = vmatpush.msra.mxu0 %v74
    %114 = vmatpush.msra.mxu0 %v73
    %115 = vmatpush.msra.mxu0 %v72
    %116 = vmatpush.msra.mxu0 %v71
    %117 = vmatpush.msra.mxu0 %v70
    %118 = vmatpush.msra.mxu0 %v69
    %119 = vmatpush.msra.mxu0 %v68
    %120 = vmatmul.f32.gmra.mxu0 %v66
    %v121 = vpop.f32.mrf.mxu0
    %v122 = vadd.f32 %v102, %v121
    %123 = vdwg.mxu0
    %124 = vmatpush.msra.mxu0 %v99
    %125 = vmatpush.msra.mxu0 %v98
    %126 = vmatpush.msra.mxu0 %v97
    %127 = vmatpush.msra.mxu0 %v96
    %128 = vmatpush.msra.mxu0 %v95
    %129 = vmatpush.msra.mxu0 %v94
    %130 = vmatpush.msra.mxu0 %v93
    %131 = vmatpush.msra.mxu0 %v92
    %132 = vmatpush.msra.mxu0 %v91
    %133 = vmatpush.msra.mxu0 %v90
    %134 = vmatpush.msra.mxu0 %v89
    %135 = vmatpush.msra.mxu0 %v88
    %136 = vmatpush.msra.mxu0 %v87
    %137 = vmatpush.msra.mxu0 %v86
    %138 = vmatpush.msra.mxu0 %v85
    %139 = vmatpush.msra.mxu0 %v84
    %140 = vmatmul.f32.gmra.mxu0 %v67
    %v141 = vpop.f32.mrf.mxu0
    %v142 = vadd.f32 %v122, %v141
    %143 = vdwg.mxu0
    %v144 = vmax.f32 %v142, 0.0
    %v145 = vld [vmem:[#allocation7] sm:$0xff]
    %v146 = vld [vmem:[#allocation7 + $0x8] sm:$0xff]
    %v147 = vld [vmem:[#allocation7 + $0x10] sm:$0xff]
    %v148 = vld [vmem:[#allocation7 + $0x18] sm:$0xff]
    %v149 = vld [vmem:[#allocation7 + $0x20] sm:$0xff]
    %v150 = vld [vmem:[#allocation7 + $0x28] sm:$0xff]
    %v151 = vld [vmem:[#allocation7 + $0x30] sm:$0xff]
    %v152 = vld [vmem:[#allocation7 + $0x38] sm:$0xff]
    %v153 = vld [vmem:[#allocation7 + $0x40] sm:$0xff]
    %v154 = vld [vmem:[#allocation7 + $0x48] sm:$0xff]
    %v155 = vld [vmem:[#allocation7 + $0x50] sm:$0xff]
    %v156 = vld [vmem:[#allocation7 + $0x58] sm:$0xff]
    %v157 = vld [vmem:[#allocation7 + $0x60] sm:$0xff]
    %v158 = vld [vmem:[#allocation7 + $0x68] sm:$0xff]
    %v159 = vld [vmem:[#allocation7 + $0x70] sm:$0xff]
    %v160 = vld [vmem:[#allocation7 + $0x78] sm:$0xff]
    %v161 = vld [vmem:[%s4] sm:$0x1]
    %v163 = vperm.slane %v161, 0
    %165 = vmatpush.msra.mxu0 %v160
    %166 = vmatpush.msra.mxu0 %v159
    %167 = vmatpush.msra.mxu0 %v158
    %168 = vmatpush.msra.mxu0 %v157
    %169 = vmatpush.msra.mxu0 %v156
    %170 = vmatpush.msra.mxu0 %v155
    %171 = vmatpush.msra.mxu0 %v154
    %172 = vmatpush.msra.mxu0 %v153
    %173 = vmatpush.msra.mxu0 %v152
    %174 = vmatpush.msra.mxu0 %v151
    %175 = vmatpush.msra.mxu0 %v150
    %176 = vmatpush.msra.mxu0 %v149
    %177 = vmatpush.msra.mxu0 %v148
    %178 = vmatpush.msra.mxu0 %v147
    %179 = vmatpush.msra.mxu0 %v146
    %180 = vmatpush.msra.mxu0 %v145
    %181 = vmatmul.f32.gmra.mxu0 %v144
    %v182 = vpop.f32.mrf.mxu0
    %v183 = vadd.f32 %v163, %v182
    %184 = vdwg.mxu0
    %185 = vst [vmem:[#allocation8] sm:$0xff] %v183
    // Predicated region
    $region34: #{tpu_custom_call.1} parent=1 // pred_check
      _
    $region35: #{tpu_custom_call.1} parent=1 // pred_check_branch
      %187 = sbr.rel (0) target = $region37
    $region36: #{tpu_custom_call.1} parent=1 // pred_region
      %189 = vsyncadd [#allocation4], 0
      %s191 = sshll.u32 [#allocation8], 4
      %s192 = int_to_ptr.vmem [resolvable:$true] %s191
      %s193 = sshll.u32 %s5, 4
      %s194 = int_to_ptr.hbm [resolvable:$true] %s193
      %196 = dma.vmem_to_hbm [thread:$0]  %s192, 128, %s194, [#allocation4]
    $region37: #{tpu_custom_call.1} parent=1 // pred_fallthru
      _
    // Predicated region
    $region38: #{tpu_custom_call.1} parent=1 // pred_check
      _
    $region39: #{tpu_custom_call.1} parent=1 // pred_check_branch
      %198 = sbr.rel (0) target = $region41
    $region40: #{tpu_custom_call.1} parent=1 // pred_region
      %200 = dma.done [#allocation4], 128
    $region41: #{tpu_custom_call.1} parent=1 // pred_fallthru
      _
    %201 = vsyncpa [#allocation3], 1
    %202 = vsyncpa [#allocation6], 1
    %203 = vsyncpa [#allocation4], 1

</llo_original>
